<compile_context>
chip_gen: v7x
topology: tpu7x:2x2x1
jax: 0.10.0
libtpu: 0.0.40
codegen_flags: <defaults>
</compile_context>

<pallas_src>
import jax
import jax.numpy as jnp
from jax.experimental import pallas as pl
from jax.experimental.pallas import tpu as pltpu

# ---- problem sizes (small, consistent with (bs, src_len, dim) forward) ----
B = 2          # batch
S = 8          # src_len
D = 32         # model dim
NUM_HEADS = 4
D_HEAD = D // NUM_HEADS
D_FF = 64      # FFN hidden dim
LN_EPS = 1e-5  # PyTorch nn.LayerNorm default
NEG_INF = -1e9

# MXU operand dtype (bf16 is the standard v6e/v7x win and is safe on v5e's MXU too).
MATMUL_DTYPE = jnp.bfloat16

# Packed-parameter slab layout (all blocks start at lane 0 / row multiples of 8).
LANES = 128
W_SLAB_ROWS = 3 * D + D_FF      # 160: [wqkv | wo | w1 | w2] stacked on rows
V_SLAB_ROWS = 8                 # one vector per row


def _layer_norm(v, g, b):
    mu = jnp.mean(v, axis=-1, keepdims=True)
    var = jnp.mean((v - mu) * (v - mu), axis=-1, keepdims=True)
    return (v - mu) * jax.lax.rsqrt(var + LN_EPS) * g + b


def encoder_layer_kernel(x_ref, mask_ref, w_ref, v_ref, o_ref):
    f32 = jnp.float32
    mm = w_ref.dtype                      # matmul operand dtype (bf16 or f32)

    x = x_ref[...]                        # (B*S, D)  f32 residual stream
    mask_add = mask_ref[...]              # (B*S, B*S) f32 additive block-diagonal mask

    # ---- static slices out of the packed slabs (free view creation, lane-0 aligned) ----
    wqkv = w_ref[0:D, 0:3 * D]                       # (D, 3D)
    wo   = w_ref[D:2 * D, 0:D]                       # (D, D)
    w1   = w_ref[2 * D:3 * D, 0:D_FF]                # (D, D_FF)
    w2   = w_ref[3 * D:3 * D + D_FF, 0:D]            # (D_FF, D)

    bqkv = v_ref[0:1, 0:3 * D]                       # (1, 3D)
    b1   = v_ref[1:2, 0:D_FF]                        # (1, D_FF)
    bo   = v_ref[2:3, 0:D]
    b2   = v_ref[3:4, 0:D]
    ln1g = v_ref[4:5, 0:D]
    ln1b = v_ref[5:6, 0:D]
    ln2g = v_ref[6:7, 0:D]
    ln2b = v_ref[7:8, 0:D]

    # ---------------- self-attention sublayer (pre-norm) ----------------
    xn = _layer_norm(x, ln1g, ln1b)                  # f32

    # Fused QKV projection: (B*S, D) @ (D, 3D) -> (B*S, 3D), f32 accumulate.
    qkv = jnp.dot(xn.astype(mm), wqkv, preferred_element_type=f32) + bqkv

    scale = 1.0 / (float(D_HEAD) ** 0.5)
    ctx_heads = []
    # 2-D per-head attention over the flattened (B*S) axis; the block-diagonal
    # additive mask kills cross-batch pairs (exp underflows to exactly 0 in f32).
    for h in range(NUM_HEADS):
        q_h = qkv[:, h * D_HEAD:(h + 1) * D_HEAD]                # (B*S, Dh)
        k_h = qkv[:, D + h * D_HEAD:D + (h + 1) * D_HEAD]        # (B*S, Dh)
        v_h = qkv[:, 2 * D + h * D_HEAD:2 * D + (h + 1) * D_HEAD]

        # q @ k^T without a materialized transpose (contract last dims).
        s = jax.lax.dot_general(
            q_h.astype(mm), k_h.astype(mm),
            dimension_numbers=(((1,), (1,)), ((), ())),
            preferred_element_type=f32) * scale                  # (B*S, B*S)
        s = s + mask_add
        s = s - jnp.max(s, axis=-1, keepdims=True)
        p = jnp.exp(s)
        p = p / jnp.sum(p, axis=-1, keepdims=True)               # exact (EUP has slack)

        ctx_heads.append(
            jnp.dot(p.astype(mm), v_h.astype(mm), preferred_element_type=f32))

    ctx = jnp.concatenate(ctx_heads, axis=-1)                    # (B*S, D)

    attn = jnp.dot(ctx.astype(mm), wo, preferred_element_type=f32) + bo
    x = x + attn                                                 # residual (dropout == identity)

    # ---------------- position-wise FFN sublayer ----------------
    xn2 = _layer_norm(x, ln2g, ln2b)
    h1 = jnp.dot(xn2.astype(mm), w1, preferred_element_type=f32) + b1
    h1 = jnp.maximum(h1, 0.0)
    ff = jnp.dot(h1.astype(mm), w2, preferred_element_type=f32) + b2

    # Single contiguous store of the whole output block.
    o_ref[...] = (x + ff).astype(o_ref.dtype)


def _pack_params(params):
    """Pack all 16 parameter tensors into two lane-dense slabs (fewer, bigger DMAs)."""
    (wq, bq, wk, bk, wv, bv, wo, bo, ln1g, ln1b,
     w1, b1, w2, b2, ln2g, ln2b) = params

    wslab = jnp.zeros((W_SLAB_ROWS, LANES), jnp.float32)
    wslab = wslab.at[0:D, 0:3 * D].set(jnp.concatenate([wq, wk, wv], axis=1))
    wslab = wslab.at[D:2 * D, 0:D].set(wo)
    wslab = wslab.at[2 * D:3 * D, 0:D_FF].set(w1)
    wslab = wslab.at[3 * D:3 * D + D_FF, 0:D].set(w2)
    wslab = wslab.astype(MATMUL_DTYPE)          # weights travel in the MXU operand dtype

    vslab = jnp.zeros((V_SLAB_ROWS, LANES), jnp.float32)
    vslab = vslab.at[0, 0:3 * D].set(jnp.concatenate([bq, bk, bv], axis=1)[0])
    vslab = vslab.at[1, 0:D_FF].set(b1[0])
    vslab = vslab.at[2, 0:D].set(bo[0])
    vslab = vslab.at[3, 0:D].set(b2[0])
    vslab = vslab.at[4, 0:D].set(ln1g[0])
    vslab = vslab.at[5, 0:D].set(ln1b[0])
    vslab = vslab.at[6, 0:D].set(ln2g[0])
    vslab = vslab.at[7, 0:D].set(ln2b[0])
    return wslab, vslab


@jax.jit
def transformer_encoder_layer(x, mask, params):
    wslab, vslab = _pack_params(params)
    x_flat = x.reshape(B * S, D)

    # Precompute the additive mask in the wrapper (XLA fuses it for free):
    # block-diagonal over batches, 0 where (same batch AND mask==keep), -1e9 otherwise.
    keep = jnp.einsum('bij,bc->bicj', mask,
                      jnp.eye(B, dtype=mask.dtype)).reshape(B * S, B * S)
    mask_add = jnp.where(keep > 0, 0.0, NEG_INF).astype(jnp.float32)

    out = pl.pallas_call(
        encoder_layer_kernel,
        out_shape=jax.ShapeDtypeStruct((B * S, D), x.dtype),
        in_specs=[pl.BlockSpec(memory_space=pltpu.MemorySpace.VMEM)] * 4,
        out_specs=pl.BlockSpec(memory_space=pltpu.MemorySpace.VMEM),
        compiler_params=pltpu.CompilerParams(vmem_limit_bytes=16 * 1024 * 1024),
    )(x_flat, mask_add, wslab, vslab)

    return out.reshape(B, S, D)


# ---------------- pure-JAX reference (accurate f32, for the sanity check) ----------------
def reference(x, mask, params):
    (wq, bq, wk, bk, wv, bv, wo, bo, ln1g, ln1b,
     w1, b1, w2, b2, ln2g, ln2b) = params
    P = jax.lax.Precision.HIGHEST

    def ln(v, g, b):
        mu = jnp.mean(v, -1, keepdims=True)
        var = jnp.mean((v - mu) ** 2, -1, keepdims=True)
        return (v - mu) / jnp.sqrt(var + LN_EPS) * g + b

    xn = ln(x, ln1g, ln1b)
    q = jnp.dot(xn, wq, precision=P) + bq
    k = jnp.dot(xn, wk, precision=P) + bk
    v = jnp.dot(xn, wv, precision=P) + bv
    qh = q.reshape(B, S, NUM_HEADS, D_HEAD).transpose(0, 2, 1, 3)
    kh = k.reshape(B, S, NUM_HEADS, D_HEAD).transpose(0, 2, 1, 3)
    vh = v.reshape(B, S, NUM_HEADS, D_HEAD).transpose(0, 2, 1, 3)
    scores = jnp.einsum("bhqd,bhkd->bhqk", qh, kh,
                        precision=P) / jnp.sqrt(jnp.float32(D_HEAD))
    scores = jnp.where(mask[:, None] == 0, NEG_INF, scores)
    p = jax.nn.softmax(scores, axis=-1)
    attn = jnp.einsum("bhqk,bhkd->bhqd", p, vh,
                      precision=P).transpose(0, 2, 1, 3).reshape(B, S, D)
    x = x + (jnp.dot(attn, wo, precision=P) + bo)
    xn2 = ln(x, ln2g, ln2b)
    h1 = jnp.maximum(jnp.dot(xn2, w1, precision=P) + b1, 0.0)
    ff = jnp.dot(h1, w2, precision=P) + b2
    return x + ff


def make_params(key):
    ks = jax.random.split(key, 8)
    scale = 0.1
    wq = scale * jax.random.normal(ks[0], (D, D), jnp.float32)
    wk = scale * jax.random.normal(ks[1], (D, D), jnp.float32)
    wv = scale * jax.random.normal(ks[2], (D, D), jnp.float32)
    wo = scale * jax.random.normal(ks[3], (D, D), jnp.float32)
    bq = scale * jax.random.normal(ks[4], (1, D), jnp.float32)
    bk = jnp.zeros((1, D), jnp.float32)
    bv = jnp.zeros((1, D), jnp.float32)
    bo = jnp.zeros((1, D), jnp.float32)
    ln1g = jnp.ones((1, D), jnp.float32)
    ln1b = jnp.zeros((1, D), jnp.float32)
    w1 = scale * jax.random.normal(ks[5], (D, D_FF), jnp.float32)
    b1 = scale * jax.random.normal(ks[6], (1, D_FF), jnp.float32)
    w2 = scale * jax.random.normal(ks[7], (D_FF, D), jnp.float32)
    b2 = jnp.zeros((1, D), jnp.float32)
    ln2g = jnp.ones((1, D), jnp.float32)
    ln2b = jnp.zeros((1, D), jnp.float32)
    return (wq, bq, wk, bk, wv, bv, wo, bo, ln1g, ln1b,
            w1, b1, w2, b2, ln2g, ln2b)


if __name__ == "__main__":
    key = jax.random.PRNGKey(0)
    kx, kp, km = jax.random.split(key, 3)

    x = jax.random.normal(kx, (B, S, D), jnp.float32)
    # padding mask: last 2 tokens of batch 1 are padding (no fully-masked query rows).
    valid = jnp.array([S, S - 2], jnp.int32)
    key_mask = (jnp.arange(S)[None, :] < valid[:, None]).astype(jnp.float32)   # (B, S)
    mask = key_mask[:, None, :] * jnp.ones((B, S, 1), jnp.float32)             # (B, S, S)

    params = make_params(kp)

    out = transformer_encoder_layer(x, mask, params)
    out = jax.block_until_ready(out)

    ref = reference(x, mask, params)
    assert out.shape == (B, S, D)
    # bf16 MXU operands bound the error; with MATMUL_DTYPE = f32 this tightens to ~1e-4.
    tol = 1e-4 if MATMUL_DTYPE == jnp.float32 else 2e-2
    assert jnp.allclose(out, ref, atol=tol, rtol=tol), "mismatch vs reference"

    print("KERNEL_OK")
</pallas_src>

<mosaic_0001>
module attributes {stable_mosaic.version = 11 : i64} {
  func.func @encoder_layer_kernel(%arg0: memref<16x32xf32, #tpu.memory_space<vmem>>, %arg1: memref<16x16xf32, #tpu.memory_space<vmem>>, %arg2: memref<160x128xbf16, #tpu.memory_space<vmem>>, %arg3: memref<8x128xf32, #tpu.memory_space<vmem>>, %arg4: memref<16x32xf32, #tpu.memory_space<vmem>>) attributes {dimension_semantics = [], scalar_prefetch = 0 : i64, scratch_operands = 0 : i64, tpu.core_type = #tpu.core_type<tc>} {
    %c0 = arith.constant 0 : index
    %c0_0 = arith.constant 0 : index
    %0 = vector.load %arg0[%c0, %c0_0] : memref<16x32xf32, #tpu.memory_space<vmem>>, vector<16x32xf32>
    %c0_1 = arith.constant 0 : index
    %c0_2 = arith.constant 0 : index
    %1 = vector.load %arg1[%c0_1, %c0_2] : memref<16x16xf32, #tpu.memory_space<vmem>>, vector<16x16xf32>
    %c0_3 = arith.constant 0 : index
    %c0_4 = arith.constant 0 : index
    %2 = vector.load %arg2[%c0_3, %c0_4] : memref<160x128xbf16, #tpu.memory_space<vmem>>, vector<32x96xbf16>
    %c32 = arith.constant 32 : index
    %c0_5 = arith.constant 0 : index
    %3 = vector.load %arg2[%c32, %c0_5] : memref<160x128xbf16, #tpu.memory_space<vmem>>, vector<32x32xbf16>
    %c64 = arith.constant 64 : index
    %c0_6 = arith.constant 0 : index
    %4 = vector.load %arg2[%c64, %c0_6] : memref<160x128xbf16, #tpu.memory_space<vmem>>, vector<32x64xbf16>
    %c96 = arith.constant 96 : index
    %c0_7 = arith.constant 0 : index
    %5 = vector.load %arg2[%c96, %c0_7] : memref<160x128xbf16, #tpu.memory_space<vmem>>, vector<64x32xbf16>
    %c0_8 = arith.constant 0 : index
    %c0_9 = arith.constant 0 : index
    %6 = vector.load %arg3[%c0_8, %c0_9] : memref<8x128xf32, #tpu.memory_space<vmem>>, vector<1x96xf32>
    %c1 = arith.constant 1 : index
    %c0_10 = arith.constant 0 : index
    %7 = vector.load %arg3[%c1, %c0_10] : memref<8x128xf32, #tpu.memory_space<vmem>>, vector<1x64xf32>
    %c2 = arith.constant 2 : index
    %c0_11 = arith.constant 0 : index
    %8 = vector.load %arg3[%c2, %c0_11] : memref<8x128xf32, #tpu.memory_space<vmem>>, vector<1x32xf32>
    %c3 = arith.constant 3 : index
    %c0_12 = arith.constant 0 : index
    %9 = vector.load %arg3[%c3, %c0_12] : memref<8x128xf32, #tpu.memory_space<vmem>>, vector<1x32xf32>
    %c4 = arith.constant 4 : index
    %c0_13 = arith.constant 0 : index
    %10 = vector.load %arg3[%c4, %c0_13] : memref<8x128xf32, #tpu.memory_space<vmem>>, vector<1x32xf32>
    %c5 = arith.constant 5 : index
    %c0_14 = arith.constant 0 : index
    %11 = vector.load %arg3[%c5, %c0_14] : memref<8x128xf32, #tpu.memory_space<vmem>>, vector<1x32xf32>
    %c6 = arith.constant 6 : index
    %c0_15 = arith.constant 0 : index
    %12 = vector.load %arg3[%c6, %c0_15] : memref<8x128xf32, #tpu.memory_space<vmem>>, vector<1x32xf32>
    %c7 = arith.constant 7 : index
    %c0_16 = arith.constant 0 : index
    %13 = vector.load %arg3[%c7, %c0_16] : memref<8x128xf32, #tpu.memory_space<vmem>>, vector<1x32xf32>
    %cst = arith.constant dense<0.000000e+00> : vector<16xf32>
    %14 = vector.multi_reduction <add>, %0, %cst [1] : vector<16x32xf32> to vector<16xf32>
    %15 = vector.shape_cast %14 : vector<16xf32> to vector<16x1xf32>
    %cst_17 = arith.constant 3.200000e+01 : f32
    %16 = vector.broadcast %cst_17 : f32 to vector<16x1xf32>
    %17 = arith.divf %15, %16 : vector<16x1xf32>
    %18 = vector.broadcast %17 : vector<16x1xf32> to vector<16x32xf32>
    %19 = arith.subf %0, %18 : vector<16x32xf32>
    %20 = vector.broadcast %17 : vector<16x1xf32> to vector<16x32xf32>
    %21 = arith.subf %0, %20 : vector<16x32xf32>
    %22 = arith.mulf %19, %21 : vector<16x32xf32>
    %cst_18 = arith.constant dense<0.000000e+00> : vector<16xf32>
    %23 = vector.multi_reduction <add>, %22, %cst_18 [1] : vector<16x32xf32> to vector<16xf32>
    %24 = vector.shape_cast %23 : vector<16xf32> to vector<16x1xf32>
    %cst_19 = arith.constant 3.200000e+01 : f32
    %25 = vector.broadcast %cst_19 : f32 to vector<16x1xf32>
    %26 = arith.divf %24, %25 : vector<16x1xf32>
    %27 = vector.broadcast %17 : vector<16x1xf32> to vector<16x32xf32>
    %28 = arith.subf %0, %27 : vector<16x32xf32>
    %cst_20 = arith.constant 9.99999974E-6 : f32
    %29 = vector.broadcast %cst_20 : f32 to vector<16x1xf32>
    %30 = arith.addf %26, %29 : vector<16x1xf32>
    %31 = math.rsqrt %30 : vector<16x1xf32>
    %32 = vector.broadcast %31 : vector<16x1xf32> to vector<16x32xf32>
    %33 = arith.mulf %28, %32 : vector<16x32xf32>
    %34 = vector.broadcast %10 : vector<1x32xf32> to vector<16x32xf32>
    %35 = arith.mulf %33, %34 : vector<16x32xf32>
    %36 = vector.broadcast %11 : vector<1x32xf32> to vector<16x32xf32>
    %37 = arith.addf %35, %36 : vector<16x32xf32>
    %38 = arith.truncf %37 : vector<16x32xf32> to vector<16x32xbf16>
    %cst_21 = arith.constant dense<0.000000e+00> : vector<16x96xf32>
    %39 = tpu.matmul %38, %2, %cst_21 {dimension_numbers = #tpu.dot_dimension_numbers<[1], [0], [0], [1], [0, 0, 1, 1], [], []>} : vector<16x32xbf16>, vector<32x96xbf16>, vector<16x96xf32> -> vector<16x96xf32>
    %40 = vector.broadcast %6 : vector<1x96xf32> to vector<16x96xf32>
    %41 = arith.addf %39, %40 : vector<16x96xf32>
    %42 = vector.extract_strided_slice %41 {offsets = [0, 0], sizes = [16, 8], strides = [1, 1]} : vector<16x96xf32> to vector<16x8xf32>
    %43 = vector.extract_strided_slice %41 {offsets = [0, 32], sizes = [16, 8], strides = [1, 1]} : vector<16x96xf32> to vector<16x8xf32>
    %44 = vector.extract_strided_slice %41 {offsets = [0, 64], sizes = [16, 8], strides = [1, 1]} : vector<16x96xf32> to vector<16x8xf32>
    %45 = arith.truncf %42 : vector<16x8xf32> to vector<16x8xbf16>
    %46 = arith.truncf %43 : vector<16x8xf32> to vector<16x8xbf16>
    %cst_22 = arith.constant dense<0.000000e+00> : vector<16x16xf32>
    %47 = tpu.matmul %45, %46, %cst_22 {dimension_numbers = #tpu.dot_dimension_numbers<[1], [1], [0], [0], [0, 0, 1, 0], [], []>} : vector<16x8xbf16>, vector<16x8xbf16>, vector<16x16xf32> -> vector<16x16xf32>
    %cst_23 = arith.constant 0.353553385 : f32
    %48 = vector.broadcast %cst_23 : f32 to vector<16x16xf32>
    %49 = arith.mulf %47, %48 : vector<16x16xf32>
    %50 = arith.addf %49, %1 : vector<16x16xf32>
    %cst_24 = arith.constant dense<0xFF800000> : vector<16xf32>
    %51 = vector.multi_reduction <maximumf>, %50, %cst_24 [1] : vector<16x16xf32> to vector<16xf32>
    %52 = vector.shape_cast %51 : vector<16xf32> to vector<16x1xf32>
    %53 = vector.broadcast %52 : vector<16x1xf32> to vector<16x16xf32>
    %54 = arith.subf %50, %53 : vector<16x16xf32>
    %55 = math.exp %54 : vector<16x16xf32>
    %cst_25 = arith.constant dense<0.000000e+00> : vector<16xf32>
    %56 = vector.multi_reduction <add>, %55, %cst_25 [1] : vector<16x16xf32> to vector<16xf32>
    %57 = vector.shape_cast %56 : vector<16xf32> to vector<16x1xf32>
    %58 = vector.broadcast %57 : vector<16x1xf32> to vector<16x16xf32>
    %59 = arith.divf %55, %58 : vector<16x16xf32>
    %60 = arith.truncf %59 : vector<16x16xf32> to vector<16x16xbf16>
    %61 = arith.truncf %44 : vector<16x8xf32> to vector<16x8xbf16>
    %cst_26 = arith.constant dense<0.000000e+00> : vector<16x8xf32>
    %62 = tpu.matmul %60, %61, %cst_26 {dimension_numbers = #tpu.dot_dimension_numbers<[1], [0], [0], [1], [0, 0, 1, 1], [], []>} : vector<16x16xbf16>, vector<16x8xbf16>, vector<16x8xf32> -> vector<16x8xf32>
    %63 = vector.extract_strided_slice %41 {offsets = [0, 8], sizes = [16, 8], strides = [1, 1]} : vector<16x96xf32> to vector<16x8xf32>
    %64 = vector.extract_strided_slice %41 {offsets = [0, 40], sizes = [16, 8], strides = [1, 1]} : vector<16x96xf32> to vector<16x8xf32>
    %65 = vector.extract_strided_slice %41 {offsets = [0, 72], sizes = [16, 8], strides = [1, 1]} : vector<16x96xf32> to vector<16x8xf32>
    %66 = arith.truncf %63 : vector<16x8xf32> to vector<16x8xbf16>
    %67 = arith.truncf %64 : vector<16x8xf32> to vector<16x8xbf16>
    %cst_27 = arith.constant dense<0.000000e+00> : vector<16x16xf32>
    %68 = tpu.matmul %66, %67, %cst_27 {dimension_numbers = #tpu.dot_dimension_numbers<[1], [1], [0], [0], [0, 0, 1, 0], [], []>} : vector<16x8xbf16>, vector<16x8xbf16>, vector<16x16xf32> -> vector<16x16xf32>
    %cst_28 = arith.constant 0.353553385 : f32
    %69 = vector.broadcast %cst_28 : f32 to vector<16x16xf32>
    %70 = arith.mulf %68, %69 : vector<16x16xf32>
    %71 = arith.addf %70, %1 : vector<16x16xf32>
    %cst_29 = arith.constant dense<0xFF800000> : vector<16xf32>
    %72 = vector.multi_reduction <maximumf>, %71, %cst_29 [1] : vector<16x16xf32> to vector<16xf32>
    %73 = vector.shape_cast %72 : vector<16xf32> to vector<16x1xf32>
    %74 = vector.broadcast %73 : vector<16x1xf32> to vector<16x16xf32>
    %75 = arith.subf %71, %74 : vector<16x16xf32>
    %76 = math.exp %75 : vector<16x16xf32>
    %cst_30 = arith.constant dense<0.000000e+00> : vector<16xf32>
    %77 = vector.multi_reduction <add>, %76, %cst_30 [1] : vector<16x16xf32> to vector<16xf32>
    %78 = vector.shape_cast %77 : vector<16xf32> to vector<16x1xf32>
    %79 = vector.broadcast %78 : vector<16x1xf32> to vector<16x16xf32>
    %80 = arith.divf %76, %79 : vector<16x16xf32>
    %81 = arith.truncf %80 : vector<16x16xf32> to vector<16x16xbf16>
    %82 = arith.truncf %65 : vector<16x8xf32> to vector<16x8xbf16>
    %cst_31 = arith.constant dense<0.000000e+00> : vector<16x8xf32>
    %83 = tpu.matmul %81, %82, %cst_31 {dimension_numbers = #tpu.dot_dimension_numbers<[1], [0], [0], [1], [0, 0, 1, 1], [], []>} : vector<16x16xbf16>, vector<16x8xbf16>, vector<16x8xf32> -> vector<16x8xf32>
    %84 = vector.extract_strided_slice %41 {offsets = [0, 16], sizes = [16, 8], strides = [1, 1]} : vector<16x96xf32> to vector<16x8xf32>
    %85 = vector.extract_strided_slice %41 {offsets = [0, 48], sizes = [16, 8], strides = [1, 1]} : vector<16x96xf32> to vector<16x8xf32>
    %86 = vector.extract_strided_slice %41 {offsets = [0, 80], sizes = [16, 8], strides = [1, 1]} : vector<16x96xf32> to vector<16x8xf32>
    %87 = arith.truncf %84 : vector<16x8xf32> to vector<16x8xbf16>
    %88 = arith.truncf %85 : vector<16x8xf32> to vector<16x8xbf16>
    %cst_32 = arith.constant dense<0.000000e+00> : vector<16x16xf32>
    %89 = tpu.matmul %87, %88, %cst_32 {dimension_numbers = #tpu.dot_dimension_numbers<[1], [1], [0], [0], [0, 0, 1, 0], [], []>} : vector<16x8xbf16>, vector<16x8xbf16>, vector<16x16xf32> -> vector<16x16xf32>
    %cst_33 = arith.constant 0.353553385 : f32
    %90 = vector.broadcast %cst_33 : f32 to vector<16x16xf32>
    %91 = arith.mulf %89, %90 : vector<16x16xf32>
    %92 = arith.addf %91, %1 : vector<16x16xf32>
    %cst_34 = arith.constant dense<0xFF800000> : vector<16xf32>
    %93 = vector.multi_reduction <maximumf>, %92, %cst_34 [1] : vector<16x16xf32> to vector<16xf32>
    %94 = vector.shape_cast %93 : vector<16xf32> to vector<16x1xf32>
    %95 = vector.broadcast %94 : vector<16x1xf32> to vector<16x16xf32>
    %96 = arith.subf %92, %95 : vector<16x16xf32>
    %97 = math.exp %96 : vector<16x16xf32>
    %cst_35 = arith.constant dense<0.000000e+00> : vector<16xf32>
    %98 = vector.multi_reduction <add>, %97, %cst_35 [1] : vector<16x16xf32> to vector<16xf32>
    %99 = vector.shape_cast %98 : vector<16xf32> to vector<16x1xf32>
    %100 = vector.broadcast %99 : vector<16x1xf32> to vector<16x16xf32>
    %101 = arith.divf %97, %100 : vector<16x16xf32>
    %102 = arith.truncf %101 : vector<16x16xf32> to vector<16x16xbf16>
    %103 = arith.truncf %86 : vector<16x8xf32> to vector<16x8xbf16>
    %cst_36 = arith.constant dense<0.000000e+00> : vector<16x8xf32>
    %104 = tpu.matmul %102, %103, %cst_36 {dimension_numbers = #tpu.dot_dimension_numbers<[1], [0], [0], [1], [0, 0, 1, 1], [], []>} : vector<16x16xbf16>, vector<16x8xbf16>, vector<16x8xf32> -> vector<16x8xf32>
    %105 = vector.extract_strided_slice %41 {offsets = [0, 24], sizes = [16, 8], strides = [1, 1]} : vector<16x96xf32> to vector<16x8xf32>
    %106 = vector.extract_strided_slice %41 {offsets = [0, 56], sizes = [16, 8], strides = [1, 1]} : vector<16x96xf32> to vector<16x8xf32>
    %107 = vector.extract_strided_slice %41 {offsets = [0, 88], sizes = [16, 8], strides = [1, 1]} : vector<16x96xf32> to vector<16x8xf32>
    %108 = arith.truncf %105 : vector<16x8xf32> to vector<16x8xbf16>
    %109 = arith.truncf %106 : vector<16x8xf32> to vector<16x8xbf16>
    %cst_37 = arith.constant dense<0.000000e+00> : vector<16x16xf32>
    %110 = tpu.matmul %108, %109, %cst_37 {dimension_numbers = #tpu.dot_dimension_numbers<[1], [1], [0], [0], [0, 0, 1, 0], [], []>} : vector<16x8xbf16>, vector<16x8xbf16>, vector<16x16xf32> -> vector<16x16xf32>
    %cst_38 = arith.constant 0.353553385 : f32
    %111 = vector.broadcast %cst_38 : f32 to vector<16x16xf32>
    %112 = arith.mulf %110, %111 : vector<16x16xf32>
    %113 = arith.addf %112, %1 : vector<16x16xf32>
    %cst_39 = arith.constant dense<0xFF800000> : vector<16xf32>
    %114 = vector.multi_reduction <maximumf>, %113, %cst_39 [1] : vector<16x16xf32> to vector<16xf32>
    %115 = vector.shape_cast %114 : vector<16xf32> to vector<16x1xf32>
    %116 = vector.broadcast %115 : vector<16x1xf32> to vector<16x16xf32>
    %117 = arith.subf %113, %116 : vector<16x16xf32>
    %118 = math.exp %117 : vector<16x16xf32>
    %cst_40 = arith.constant dense<0.000000e+00> : vector<16xf32>
    %119 = vector.multi_reduction <add>, %118, %cst_40 [1] : vector<16x16xf32> to vector<16xf32>
    %120 = vector.shape_cast %119 : vector<16xf32> to vector<16x1xf32>
    %121 = vector.broadcast %120 : vector<16x1xf32> to vector<16x16xf32>
    %122 = arith.divf %118, %121 : vector<16x16xf32>
    %123 = arith.truncf %122 : vector<16x16xf32> to vector<16x16xbf16>
    %124 = arith.truncf %107 : vector<16x8xf32> to vector<16x8xbf16>
    %cst_41 = arith.constant dense<0.000000e+00> : vector<16x8xf32>
    %125 = tpu.matmul %123, %124, %cst_41 {dimension_numbers = #tpu.dot_dimension_numbers<[1], [0], [0], [1], [0, 0, 1, 1], [], []>} : vector<16x16xbf16>, vector<16x8xbf16>, vector<16x8xf32> -> vector<16x8xf32>
    %126 = tpu.concatenate %62, %83, %104, %125 in 1 : vector<16x8xf32>, vector<16x8xf32>, vector<16x8xf32>, vector<16x8xf32> -> vector<16x32xf32>
    %127 = arith.truncf %126 : vector<16x32xf32> to vector<16x32xbf16>
    %cst_42 = arith.constant dense<0.000000e+00> : vector<16x32xf32>
    %128 = tpu.matmul %127, %3, %cst_42 {dimension_numbers = #tpu.dot_dimension_numbers<[1], [0], [0], [1], [0, 0, 1, 1], [], []>} : vector<16x32xbf16>, vector<32x32xbf16>, vector<16x32xf32> -> vector<16x32xf32>
    %129 = vector.broadcast %8 : vector<1x32xf32> to vector<16x32xf32>
    %130 = arith.addf %128, %129 : vector<16x32xf32>
    %131 = arith.addf %0, %130 : vector<16x32xf32>
    %cst_43 = arith.constant dense<0.000000e+00> : vector<16xf32>
    %132 = vector.multi_reduction <add>, %131, %cst_43 [1] : vector<16x32xf32> to vector<16xf32>
    %133 = vector.shape_cast %132 : vector<16xf32> to vector<16x1xf32>
    %cst_44 = arith.constant 3.200000e+01 : f32
    %134 = vector.broadcast %cst_44 : f32 to vector<16x1xf32>
    %135 = arith.divf %133, %134 : vector<16x1xf32>
    %136 = vector.broadcast %135 : vector<16x1xf32> to vector<16x32xf32>
    %137 = arith.subf %131, %136 : vector<16x32xf32>
    %138 = vector.broadcast %135 : vector<16x1xf32> to vector<16x32xf32>
    %139 = arith.subf %131, %138 : vector<16x32xf32>
    %140 = arith.mulf %137, %139 : vector<16x32xf32>
    %cst_45 = arith.constant dense<0.000000e+00> : vector<16xf32>
    %141 = vector.multi_reduction <add>, %140, %cst_45 [1] : vector<16x32xf32> to vector<16xf32>
    %142 = vector.shape_cast %141 : vector<16xf32> to vector<16x1xf32>
    %cst_46 = arith.constant 3.200000e+01 : f32
    %143 = vector.broadcast %cst_46 : f32 to vector<16x1xf32>
    %144 = arith.divf %142, %143 : vector<16x1xf32>
    %145 = vector.broadcast %135 : vector<16x1xf32> to vector<16x32xf32>
    %146 = arith.subf %131, %145 : vector<16x32xf32>
    %cst_47 = arith.constant 9.99999974E-6 : f32
    %147 = vector.broadcast %cst_47 : f32 to vector<16x1xf32>
    %148 = arith.addf %144, %147 : vector<16x1xf32>
    %149 = math.rsqrt %148 : vector<16x1xf32>
    %150 = vector.broadcast %149 : vector<16x1xf32> to vector<16x32xf32>
    %151 = arith.mulf %146, %150 : vector<16x32xf32>
    %152 = vector.broadcast %12 : vector<1x32xf32> to vector<16x32xf32>
    %153 = arith.mulf %151, %152 : vector<16x32xf32>
    %154 = vector.broadcast %13 : vector<1x32xf32> to vector<16x32xf32>
    %155 = arith.addf %153, %154 : vector<16x32xf32>
    %156 = arith.truncf %155 : vector<16x32xf32> to vector<16x32xbf16>
    %cst_48 = arith.constant dense<0.000000e+00> : vector<16x64xf32>
    %157 = tpu.matmul %156, %4, %cst_48 {dimension_numbers = #tpu.dot_dimension_numbers<[1], [0], [0], [1], [0, 0, 1, 1], [], []>} : vector<16x32xbf16>, vector<32x64xbf16>, vector<16x64xf32> -> vector<16x64xf32>
    %158 = vector.broadcast %7 : vector<1x64xf32> to vector<16x64xf32>
    %159 = arith.addf %157, %158 : vector<16x64xf32>
    %cst_49 = arith.constant 0.000000e+00 : f32
    %160 = vector.broadcast %cst_49 : f32 to vector<16x64xf32>
    %161 = arith.maximumf %159, %160 : vector<16x64xf32>
    %162 = arith.truncf %161 : vector<16x64xf32> to vector<16x64xbf16>
    %cst_50 = arith.constant dense<0.000000e+00> : vector<16x32xf32>
    %163 = tpu.matmul %162, %5, %cst_50 {dimension_numbers = #tpu.dot_dimension_numbers<[1], [0], [0], [1], [0, 0, 1, 1], [], []>} : vector<16x64xbf16>, vector<64x32xbf16>, vector<16x32xf32> -> vector<16x32xf32>
    %164 = vector.broadcast %9 : vector<1x32xf32> to vector<16x32xf32>
    %165 = arith.addf %163, %164 : vector<16x32xf32>
    %166 = arith.addf %131, %165 : vector<16x32xf32>
    %c0_51 = arith.constant 0 : index
    %c0_52 = arith.constant 0 : index
    %167 = vector.load %arg4[%c0_51, %c0_52] : memref<16x32xf32, #tpu.memory_space<vmem>>, vector<16x32xf32>
    tpu.vector_store %arg4[%c0_51, %c0_52], %166 {strides = array<i32>} : memref<16x32xf32, #tpu.memory_space<vmem>>, vector<16x32xf32>,
    return
  }
}

</mosaic_0001>

<llo_original>
// kernel: transformer_encoder_layer.1
$region0: #{transformer_encoder_layer.1}
  #allocation0 [shape = 'u32[]', space=smem, size = 0x4, offset = 0x4, fixed_abs, tag = 'smem constant byte address 0x4 - core index']
  #allocation1 [shape = 'u32[144,128]{1,0:T(1,128)}', space=vmem, size = 0x12000, scoped, tag = 'internal scratch']
  %s0 = inlined_call_operand.vmem [shape: f32[16,32], index: 0, kind: input, shape index: {}]
  %s1 = inlined_call_operand.vmem [shape: f32[16,16], index: 1, kind: input, shape index: {}]
  %s2 = inlined_call_operand.vmem [shape: bf16[160,128], index: 2, kind: input, shape index: {}]
  %s3 = inlined_call_operand.vmem [shape: f32[8,128], index: 3, kind: input, shape index: {}]
  %s4 = inlined_call_operand.hbm [shape: f32[16,32], index: 4, kind: output, shape index: {}]
  %s5 = sld [smem:[#allocation0]]
  $region26: #{transformer_encoder_layer.1} parent=0
    _
  %s7 = ssub.s32 1, %s5
  %s8 = scalar_select 0, %s7, %s5
  $region1: #{transformer_encoder_layer.1} parent=0
    #allocation2 [shape = 'u8[8192]{0}', space=vmem, size = 0x2000, scoped, tag = 'output window, operand 0, single buffered']
    #allocation3 [shape = 's32[1]{0}', space=sflag, size = 0x4, scoped, tag = 'scoped memory for transformer_encoder_layer.1']
    %9 = vsyncpa [#allocation3], 0
    // Predicated region
    $region2: #{transformer_encoder_layer.1} parent=1 // pred_check
      _
    $region3: #{transformer_encoder_layer.1} parent=1 // pred_check_branch
      %11 = sbr.rel (0) target = $region5
    $region4: #{transformer_encoder_layer.1} parent=1 // pred_region
      _
    $region5: #{transformer_encoder_layer.1} parent=1 // pred_fallthru
      _
    // Predicated region
    $region6: #{transformer_encoder_layer.1} parent=1 // pred_check
      _
    $region7: #{transformer_encoder_layer.1} parent=1 // pred_check_branch
      %13 = sbr.rel (0) target = $region9
    $region8: #{transformer_encoder_layer.1} parent=1 // pred_region
      _
    $region9: #{transformer_encoder_layer.1} parent=1 // pred_fallthru
      _
    // Predicated region
    $region10: #{transformer_encoder_layer.1} parent=1 // pred_check
      _
    $region11: #{transformer_encoder_layer.1} parent=1 // pred_check_branch
      %15 = sbr.rel (0) target = $region13
    $region12: #{transformer_encoder_layer.1} parent=1 // pred_region
      _
    $region13: #{transformer_encoder_layer.1} parent=1 // pred_fallthru
      _
    // Predicated region
    $region14: #{transformer_encoder_layer.1} parent=1 // pred_check
      _
    $region15: #{transformer_encoder_layer.1} parent=1 // pred_check_branch
      %17 = sbr.rel (0) target = $region17
    $region16: #{transformer_encoder_layer.1} parent=1 // pred_region
      _
    $region17: #{transformer_encoder_layer.1} parent=1 // pred_fallthru
      _
    %v19 = vld [vmem:[%s0] sm:$0xff]
    %v20 = vld [vmem:[%s0 + $0x8] sm:$0xff]
    %v21 = vld [vmem:[%s1] sm:$0xff]
    %v22 = vld [vmem:[%s1 + $0x8] sm:$0xff]
    %v23 = vld [vmem:[%s2] sm:$0xf]
    %v24 = vld [vmem:[%s2 + $0x4] sm:$0xf]
    %v25 = vld [vmem:[%s2 + $0x8] sm:$0xf]
    %v26 = vld [vmem:[%s2 + $0xc] sm:$0xf]
    %v27 = vld [vmem:[%s2 + $0x10] sm:$0xf]
    %v28 = vld [vmem:[%s2 + $0x14] sm:$0xf]
    %v29 = vld [vmem:[%s2 + $0x18] sm:$0xf]
    %v30 = vld [vmem:[%s2 + $0x1c] sm:$0xf]
    %v31 = vld [vmem:[%s2 + $0x20] sm:$0xf]
    %v32 = vld [vmem:[%s2 + $0x24] sm:$0xf]
    %v33 = vld [vmem:[%s2 + $0x28] sm:$0xf]
    %v34 = vld [vmem:[%s2 + $0x2c] sm:$0xf]
    %v35 = vld [vmem:[%s2 + $0x30] sm:$0xf]
    %v36 = vld [vmem:[%s2 + $0x34] sm:$0xf]
    %v37 = vld [vmem:[%s2 + $0x38] sm:$0xf]
    %v38 = vld [vmem:[%s2 + $0x3c] sm:$0xf]
    %v39 = vld [vmem:[%s2 + $0x40] sm:$0xf]
    %v40 = vld [vmem:[%s2 + $0x44] sm:$0xf]
    %v41 = vld [vmem:[%s2 + $0x48] sm:$0xf]
    %v42 = vld [vmem:[%s2 + $0x4c] sm:$0xf]
    %v43 = vld [vmem:[%s3] sm:$0x1]
    %v44 = vld [vmem:[%s3 + $0x1] sm:$0x1]
    %v45 = vld [vmem:[%s3 + $0x2] sm:$0x1]
    %v46 = vld [vmem:[%s3 + $0x3] sm:$0x1]
    %v47 = vld [vmem:[%s3 + $0x4] sm:$0x1]
    %v48 = vld [vmem:[%s3 + $0x5] sm:$0x1]
    %v49 = vld [vmem:[%s3 + $0x6] sm:$0x1]
    %v50 = vld [vmem:[%s3 + $0x7] sm:$0x1]
    %vm51 = vcmask 261120
    %v52 = vsel %vm51, %v19, 0.0
    %53 = vadd.xlane.f32.xlu0 %v52
    %v54 = vpop.xlane.xlu0 %53
    %v55 = vsel %vm51, %v20, 0.0
    %56 = vadd.xlane.f32.xlu0 %v55
    %v57 = vpop.xlane.xlu0 %56
    %v58 = vrcp.pop 32.0
    %v59 = vmul.f32 %v54, %v58
    %v60 = vmul.f32 %v57, %v58
    %v61 = vsub.f32 %v19, %v59
    %v62 = vsub.f32 %v20, %v60
    %v63 = vmul.f32 %v61, %v61
    %v64 = vmul.f32 %v62, %v62
    %v65 = vsel %vm51, %v63, 0.0
    %66 = vadd.xlane.f32.xlu0 %v65
    %v67 = vpop.xlane.xlu0 %66
    %v68 = vsel %vm51, %v64, 0.0
    %69 = vadd.xlane.f32.xlu0 %v68
    %v70 = vpop.xlane.xlu0 %69
    %v71 = vmul.f32 %v67, %v58
    %v72 = vmul.f32 %v70, %v58
    %v73 = vadd.f32 %v71, 1e-05
    %v74 = vadd.f32 %v72, 1e-05
    %v75 = vrsqrt.pop %v73
    %v76 = vrsqrt.pop %v74
    %v77 = vmul.f32 %v61, %v75
    %v78 = vmul.f32 %v62, %v76
    %v79 = vlaneseq
    %v80 = vshrl.u32 %v79, 7
    %v81 = vsub.s32 0, %v80
    %v82 = vrot.slane %v47, %v81
    %v83 = vmul.f32 %v77, %v82
    %v84 = vmul.f32 %v78, %v82
    %v85 = vlaneseq
    %v86 = vshrl.u32 %v85, 7
    %v87 = vsub.s32 0, %v86
    %v88 = vrot.slane %v48, %v87
    %v89 = vadd.f32 %v83, %v88
    %v90 = vadd.f32 %v84, %v88
    %v91 = vpack.c.bf16 %v90, %v89
    %v92 = vlaneseq
    %v93 = vshrl.u32 %v92, 7
    %v94 = vsub.s32 0, %v93
    %v95 = vrot.slane %v43, %v94
    %v100 = vunpack.c.l.b16 %v23
    %v101 = vunpack.c.l.b16 %v24
    %v102 = vunpack.c.l.b16 %v25
    %v103 = vunpack.c.l.b16 %v26
    %v104 = vpack.c.b16 %v101, %v100
    %v105 = vpack.c.b16 %v103, %v102
    %v109 = vsel %vm51, %v91, 0
    %111 = vmatprep.subr.bf16.mxu0 0
    %112 = vmatpush1.bf16.msra.mxu0 %v104
    %113 = vmatprep.subr.bf16.mxu0 0
    %114 = vmatpush1.bf16.msra.mxu0 %v105
    %115 = vmatprep.subr.bf16.mxu0 0
    %116 = vmatpush1.bf16.msra.mxu0 0
    %117 = vmatprep.subr.bf16.mxu0 0
    %118 = vmatpush1.bf16.msra.mxu0 0
    %119 = vmatprep.subr.bf16.mxu0 0
    %120 = vmatpush1.bf16.msra.mxu0 0
    %121 = vmatprep.subr.bf16.mxu0 0
    %122 = vmatpush1.bf16.msra.mxu0 0
    %123 = vmatprep.subr.bf16.mxu0 0
    %124 = vmatpush1.bf16.msra.mxu0 0
    %125 = vmatprep.subr.bf16.mxu0 0
    %126 = vmatpush1.bf16.msra.mxu0 0
    %127 = vmatprep.subr.bf16.mxu0 0
    %128 = vmatpush1.bf16.msra.mxu0 0
    %129 = vmatprep.subr.bf16.mxu0 0
    %130 = vmatpush1.bf16.msra.mxu0 0
    %131 = vmatprep.subr.bf16.mxu0 0
    %132 = vmatpush1.bf16.msra.mxu0 0
    %133 = vmatprep.subr.bf16.mxu0 0
    %134 = vmatpush1.bf16.msra.mxu0 0
    %135 = vmatprep.subr.bf16.mxu0 0
    %136 = vmatpush1.bf16.msra.mxu0 0
    %137 = vmatprep.subr.bf16.mxu0 0
    %138 = vmatpush1.bf16.msra.mxu0 0
    %139 = vmatprep.subr.bf16.mxu0 0
    %140 = vmatpush1.bf16.msra.mxu0 0
    %141 = vmatprep.subr.bf16.mxu0 0
    %142 = vmatpush1.bf16.msra.mxu0 0
    %143 = vmatprep.mubr.bf16.mxu0 0
    %144 = vmatmul.mubr.bf16.gmra.mrb[0].mxu0 %v109
    %v145 = vpop.f32.mrb[0].mxu0
    %v146 = vadd.f32 %v95, %v145
    %v147 = vpop.f32.mrb[0].mxu0
    %v148 = vpop.f32.mrb[0].mxu0
    %v149 = vadd.f32 %v95, %v148
    %v150 = vpop.f32.mrb[0].mxu0
    %151 = vdwg.mxu0
    %v152 = vpack.c.bf16 %v149, %v146
    %154 = vrot.lane.b32.xlu0 %v152, 96
    %v155 = vpop.permute.xlu0 %154
    %vm156 = vcmask 64512
    %v158 = vsel %vm156, %v152, 0
    %v161 = vsel %vm156, %v155, 0
    %163 = vmatprep.subr.bf16.mxu0 0
    %164 = vmatpush1.bf16.xpose.msra.mxu0 %v161
    %165 = vmatprep.subr.bf16.mxu0 0
    %166 = vmatpush1.bf16.xpose.msra.mxu0 0
    %167 = vmatprep.subr.bf16.mxu0 0
    %168 = vmatpush1.bf16.xpose.msra.mxu0 0
    %169 = vmatprep.subr.bf16.mxu0 0
    %170 = vmatpush1.bf16.xpose.msra.mxu0 0
    %171 = vmatprep.subr.bf16.mxu0 0
    %172 = vmatpush1.bf16.xpose.msra.mxu0 0
    %173 = vmatprep.subr.bf16.mxu0 0
    %174 = vmatpush1.bf16.xpose.msra.mxu0 0
    %175 = vmatprep.subr.bf16.mxu0 0
    %176 = vmatpush1.bf16.xpose.msra.mxu0 0
    %177 = vmatprep.subr.bf16.mxu0 0
    %178 = vmatpush1.bf16.xpose.msra.mxu0 0
    %179 = vmatprep.subr.bf16.mxu0 0
    %180 = vmatpush1.bf16.xpose.msra.mxu0 0
    %181 = vmatprep.subr.bf16.mxu0 0
    %182 = vmatpush1.bf16.xpose.msra.mxu0 0
    %183 = vmatprep.subr.bf16.mxu0 0
    %184 = vmatpush1.bf16.xpose.msra.mxu0 0
    %185 = vmatprep.subr.bf16.mxu0 0
    %186 = vmatpush1.bf16.xpose.msra.mxu0 0
    %187 = vmatprep.subr.bf16.mxu0 0
    %188 = vmatpush1.bf16.xpose.msra.mxu0 0
    %189 = vmatprep.subr.bf16.mxu0 0
    %190 = vmatpush1.bf16.xpose.msra.mxu0 0
    %191 = vmatprep.subr.bf16.mxu0 0
    %192 = vmatpush1.bf16.xpose.msra.mxu0 0
    %193 = vmatprep.subr.bf16.mxu0 0
    %194 = vmatpush1.bf16.xpose.msra.mxu0 0
    %195 = vmatprep.mubr.bf16.mxu0 0
    %196 = vmatmul.mubr.bf16.gmra.mrb[0].mxu0 %v158
    %v197 = vpop.f32.mrb[0].mxu0
    %v198 = vadd.f32 0.0, %v197
    %v199 = vpop.f32.mrb[0].mxu0
    %v200 = vpop.f32.mrb[0].mxu0
    %v201 = vadd.f32 0.0, %v200
    %v202 = vpop.f32.mrb[0].mxu0
    %203 = vdwg.mxu0
    %v204 = vmul.f32 %v198, 0.35355338
    %v205 = vmul.f32 %v201, 0.35355338
    %v206 = vadd.f32 %v204, %v21
    %v207 = vadd.f32 %v205, %v22
    %vm208 = vcmask 130048
    %v209 = vsel %vm208, %v206, -inf
    %210 = vmax.xlane.f32.xlu0 %v209
    %v211 = vpop.xlane.xlu0 %210
    %v212 = vsel %vm208, %v207, -inf
    %213 = vmax.xlane.f32.xlu0 %v212
    %v214 = vpop.xlane.xlu0 %213
    %v215 = vsub.f32 %v206, %v211
    %v216 = vsub.f32 %v207, %v214
    %v217 = vmul.f32 %v215, 1.442695
    %v218 = vpow.pop %v217
    %v219 = vmul.f32 %v216, 1.442695
    %v220 = vpow.pop %v219
    %v221 = vsel %vm208, %v218, 0.0
    %222 = vadd.xlane.f32.xlu0 %v221
    %v223 = vpop.xlane.xlu0 %222
    %v224 = vsel %vm208, %v220, 0.0
    %225 = vadd.xlane.f32.xlu0 %v224
    %v226 = vpop.xlane.xlu0 %225
    %v227 = vrcp.pop %v223
    %v228 = vmul.f32 %v218, %v227
    %v229 = vrcp.pop %v226
    %v230 = vmul.f32 %v220, %v229
    %v231 = vpack.c.bf16 %v230, %v228
    %232 = vrot.lane.b32.xlu0 %v152, 64
    %v233 = vpop.permute.xlu0 %232
    %v236 = vsel %vm208, %v231, 0
    %238 = vmatprep.subr.bf16.mxu0 0
    %239 = vmatpush1.bf16.msra.mxu0 %v233
    %240 = vmatprep.subr.bf16.mxu0 0
    %241 = vmatpush1.bf16.msra.mxu0 0
    %242 = vmatprep.subr.bf16.mxu0 0
    %243 = vmatpush1.bf16.msra.mxu0 0
    %244 = vmatprep.subr.bf16.mxu0 0
    %245 = vmatpush1.bf16.msra.mxu0 0
    %246 = vmatprep.subr.bf16.mxu0 0
    %247 = vmatpush1.bf16.msra.mxu0 0
    %248 = vmatprep.subr.bf16.mxu0 0
    %249 = vmatpush1.bf16.msra.mxu0 0
    %250 = vmatprep.subr.bf16.mxu0 0
    %251 = vmatpush1.bf16.msra.mxu0 0
    %252 = vmatprep.subr.bf16.mxu0 0
    %253 = vmatpush1.bf16.msra.mxu0 0
    %254 = vmatprep.subr.bf16.mxu0 0
    %255 = vmatpush1.bf16.msra.mxu0 0
    %256 = vmatprep.subr.bf16.mxu0 0
    %257 = vmatpush1.bf16.msra.mxu0 0
    %258 = vmatprep.subr.bf16.mxu0 0
    %259 = vmatpush1.bf16.msra.mxu0 0
    %260 = vmatprep.subr.bf16.mxu0 0
    %261 = vmatpush1.bf16.msra.mxu0 0
    %262 = vmatprep.subr.bf16.mxu0 0
    %263 = vmatpush1.bf16.msra.mxu0 0
    %264 = vmatprep.subr.bf16.mxu0 0
    %265 = vmatpush1.bf16.msra.mxu0 0
    %266 = vmatprep.subr.bf16.mxu0 0
    %267 = vmatpush1.bf16.msra.mxu0 0
    %268 = vmatprep.subr.bf16.mxu0 0
    %269 = vmatpush1.bf16.msra.mxu0 0
    %270 = vmatprep.mubr.bf16.mxu0 0
    %271 = vmatmul.mubr.bf16.gmra.mrb[0].mxu0 %v236
    %v272 = vpop.f32.mrb[0].mxu0
    %v273 = vadd.f32 0.0, %v272
    %v274 = vpop.f32.mrb[0].mxu0
    %v275 = vpop.f32.mrb[0].mxu0
    %v276 = vadd.f32 0.0, %v275
    %v277 = vpop.f32.mrb[0].mxu0
    %278 = vdwg.mxu0
    %279 = vrot.lane.b32.xlu0 %v152, 120
    %v280 = vpop.permute.xlu0 %279
    %281 = vrot.lane.b32.xlu0 %v152, 88
    %v282 = vpop.permute.xlu0 %281
    %v284 = vsel %vm156, %v280, 0
    %v287 = vsel %vm156, %v282, 0
    %289 = vmatprep.subr.bf16.mxu0 0
    %290 = vmatpush1.bf16.xpose.msra.mxu0 %v287
    %291 = vmatprep.subr.bf16.mxu0 0
    %292 = vmatpush1.bf16.xpose.msra.mxu0 0
    %293 = vmatprep.subr.bf16.mxu0 0
    %294 = vmatpush1.bf16.xpose.msra.mxu0 0
    %295 = vmatprep.subr.bf16.mxu0 0
    %296 = vmatpush1.bf16.xpose.msra.mxu0 0
    %297 = vmatprep.subr.bf16.mxu0 0
    %298 = vmatpush1.bf16.xpose.msra.mxu0 0
    %299 = vmatprep.subr.bf16.mxu0 0
    %300 = vmatpush1.bf16.xpose.msra.mxu0 0
    %301 = vmatprep.subr.bf16.mxu0 0
    %302 = vmatpush1.bf16.xpose.msra.mxu0 0
    %303 = vmatprep.subr.bf16.mxu0 0
    %304 = vmatpush1.bf16.xpose.msra.mxu0 0
    %305 = vmatprep.subr.bf16.mxu0 0
    %306 = vmatpush1.bf16.xpose.msra.mxu0 0
    %307 = vmatprep.subr.bf16.mxu0 0
    %308 = vmatpush1.bf16.xpose.msra.mxu0 0
    %309 = vmatprep.subr.bf16.mxu0 0
    %310 = vmatpush1.bf16.xpose.msra.mxu0 0
    %311 = vmatprep.subr.bf16.mxu0 0
    %312 = vmatpush1.bf16.xpose.msra.mxu0 0
    %313 = vmatprep.subr.bf16.mxu0 0
    %314 = vmatpush1.bf16.xpose.msra.mxu0 0
    %315 = vmatprep.subr.bf16.mxu0 0
    %316 = vmatpush1.bf16.xpose.msra.mxu0 0
    %317 = vmatprep.subr.bf16.mxu0 0
    %318 = vmatpush1.bf16.xpose.msra.mxu0 0
    %319 = vmatprep.subr.bf16.mxu0 0
    %320 = vmatpush1.bf16.xpose.msra.mxu0 0
    %321 = vmatprep.mubr.bf16.mxu0 0
    %322 = vmatmul.mubr.bf16.gmra.mrb[0].mxu0 %v284
    %v323 = vpop.f32.mrb[0].mxu0
    %v324 = vadd.f32 0.0, %v323
    %v325 = vpop.f32.mrb[0].mxu0
    %v326 = vpop.f32.mrb[0].mxu0
    %v327 = vadd.f32 0.0, %v326
    %v328 = vpop.f32.mrb[0].mxu0
    %329 = vdwg.mxu0
    %v330 = vmul.f32 %v324, 0.35355338
    %v331 = vmul.f32 %v327, 0.35355338
    %v332 = vadd.f32 %v330, %v21
    %v333 = vadd.f32 %v331, %v22
    %v334 = vsel %vm208, %v332, -inf
    %335 = vmax.xlane.f32.xlu0 %v334
    %v336 = vpop.xlane.xlu0 %335
    %v337 = vsel %vm208, %v333, -inf
    %338 = vmax.xlane.f32.xlu0 %v337
    %v339 = vpop.xlane.xlu0 %338
    %v340 = vsub.f32 %v332, %v336
    %v341 = vsub.f32 %v333, %v339
    %v342 = vmul.f32 %v340, 1.442695
    %v343 = vpow.pop %v342
    %v344 = vmul.f32 %v341, 1.442695
    %v345 = vpow.pop %v344
    %v346 = vsel %vm208, %v343, 0.0
    %347 = vadd.xlane.f32.xlu0 %v346
    %v348 = vpop.xlane.xlu0 %347
    %v349 = vsel %vm208, %v345, 0.0
    %350 = vadd.xlane.f32.xlu0 %v349
    %v351 = vpop.xlane.xlu0 %350
    %v352 = vrcp.pop %v348
    %v353 = vmul.f32 %v343, %v352
    %v354 = vrcp.pop %v351
    %v355 = vmul.f32 %v345, %v354
    %v356 = vpack.c.bf16 %v355, %v353
    %357 = vrot.lane.b32.xlu0 %v152, 56
    %v358 = vpop.permute.xlu0 %357
    %v361 = vsel %vm208, %v356, 0
    %363 = vmatprep.subr.bf16.mxu0 0
    %364 = vmatpush1.bf16.msra.mxu0 %v358
    %365 = vmatprep.subr.bf16.mxu0 0
    %366 = vmatpush1.bf16.msra.mxu0 0
    %367 = vmatprep.subr.bf16.mxu0 0
    %368 = vmatpush1.bf16.msra.mxu0 0
    %369 = vmatprep.subr.bf16.mxu0 0
    %370 = vmatpush1.bf16.msra.mxu0 0
    %371 = vmatprep.subr.bf16.mxu0 0
    %372 = vmatpush1.bf16.msra.mxu0 0
    %373 = vmatprep.subr.bf16.mxu0 0
    %374 = vmatpush1.bf16.msra.mxu0 0
    %375 = vmatprep.subr.bf16.mxu0 0
    %376 = vmatpush1.bf16.msra.mxu0 0
    %377 = vmatprep.subr.bf16.mxu0 0
    %378 = vmatpush1.bf16.msra.mxu0 0
    %379 = vmatprep.subr.bf16.mxu0 0
    %380 = vmatpush1.bf16.msra.mxu0 0
    %381 = vmatprep.subr.bf16.mxu0 0
    %382 = vmatpush1.bf16.msra.mxu0 0
    %383 = vmatprep.subr.bf16.mxu0 0
    %384 = vmatpush1.bf16.msra.mxu0 0
    %385 = vmatprep.subr.bf16.mxu0 0
    %386 = vmatpush1.bf16.msra.mxu0 0
    %387 = vmatprep.subr.bf16.mxu0 0
    %388 = vmatpush1.bf16.msra.mxu0 0
    %389 = vmatprep.subr.bf16.mxu0 0
    %390 = vmatpush1.bf16.msra.mxu0 0
    %391 = vmatprep.subr.bf16.mxu0 0
    %392 = vmatpush1.bf16.msra.mxu0 0
    %393 = vmatprep.subr.bf16.mxu0 0
    %394 = vmatpush1.bf16.msra.mxu0 0
    %395 = vmatprep.mubr.bf16.mxu0 0
    %396 = vmatmul.mubr.bf16.gmra.mrb[0].mxu0 %v361
    %v397 = vpop.f32.mrb[0].mxu0
    %v398 = vadd.f32 0.0, %v397
    %v399 = vpop.f32.mrb[0].mxu0
    %v400 = vpop.f32.mrb[0].mxu0
    %v401 = vadd.f32 0.0, %v400
    %v402 = vpop.f32.mrb[0].mxu0
    %403 = vdwg.mxu0
    %404 = vrot.lane.b32.xlu0 %v152, 112
    %v405 = vpop.permute.xlu0 %404
    %406 = vrot.lane.b32.xlu0 %v152, 80
    %v407 = vpop.permute.xlu0 %406
    %v409 = vsel %vm156, %v405, 0
    %v412 = vsel %vm156, %v407, 0
    %414 = vmatprep.subr.bf16.mxu0 0
    %415 = vmatpush1.bf16.xpose.msra.mxu0 %v412
    %416 = vmatprep.subr.bf16.mxu0 0
    %417 = vmatpush1.bf16.xpose.msra.mxu0 0
    %418 = vmatprep.subr.bf16.mxu0 0
    %419 = vmatpush1.bf16.xpose.msra.mxu0 0
    %420 = vmatprep.subr.bf16.mxu0 0
    %421 = vmatpush1.bf16.xpose.msra.mxu0 0
    %422 = vmatprep.subr.bf16.mxu0 0
    %423 = vmatpush1.bf16.xpose.msra.mxu0 0
    %424 = vmatprep.subr.bf16.mxu0 0
    %425 = vmatpush1.bf16.xpose.msra.mxu0 0
    %426 = vmatprep.subr.bf16.mxu0 0
    %427 = vmatpush1.bf16.xpose.msra.mxu0 0
    %428 = vmatprep.subr.bf16.mxu0 0
    %429 = vmatpush1.bf16.xpose.msra.mxu0 0
    %430 = vmatprep.subr.bf16.mxu0 0
    %431 = vmatpush1.bf16.xpose.msra.mxu0 0
    %432 = vmatprep.subr.bf16.mxu0 0
    %433 = vmatpush1.bf16.xpose.msra.mxu0 0
    %434 = vmatprep.subr.bf16.mxu0 0
    %435 = vmatpush1.bf16.xpose.msra.mxu0 0
    %436 = vmatprep.subr.bf16.mxu0 0
    %437 = vmatpush1.bf16.xpose.msra.mxu0 0
    %438 = vmatprep.subr.bf16.mxu0 0
    %439 = vmatpush1.bf16.xpose.msra.mxu0 0
    %440 = vmatprep.subr.bf16.mxu0 0
    %441 = vmatpush1.bf16.xpose.msra.mxu0 0
    %442 = vmatprep.subr.bf16.mxu0 0
    %443 = vmatpush1.bf16.xpose.msra.mxu0 0
    %444 = vmatprep.subr.bf16.mxu0 0
    %445 = vmatpush1.bf16.xpose.msra.mxu0 0
    %446 = vmatprep.mubr.bf16.mxu0 0
    %447 = vmatmul.mubr.bf16.gmra.mrb[0].mxu0 %v409
    %v448 = vpop.f32.mrb[0].mxu0
    %v449 = vadd.f32 0.0, %v448
    %v450 = vpop.f32.mrb[0].mxu0
    %v451 = vpop.f32.mrb[0].mxu0
    %v452 = vadd.f32 0.0, %v451
    %v453 = vpop.f32.mrb[0].mxu0
    %454 = vdwg.mxu0
    %v455 = vmul.f32 %v449, 0.35355338
    %v456 = vmul.f32 %v452, 0.35355338
    %v457 = vadd.f32 %v455, %v21
    %v458 = vadd.f32 %v456, %v22
    %v459 = vsel %vm208, %v457, -inf
    %460 = vmax.xlane.f32.xlu0 %v459
    %v461 = vpop.xlane.xlu0 %460
    %v462 = vsel %vm208, %v458, -inf
    %463 = vmax.xlane.f32.xlu0 %v462
    %v464 = vpop.xlane.xlu0 %463
    %v465 = vsub.f32 %v457, %v461
    %v466 = vsub.f32 %v458, %v464
    %v467 = vmul.f32 %v465, 1.442695
    %v468 = vpow.pop %v467
    %v469 = vmul.f32 %v466, 1.442695
    %v470 = vpow.pop %v469
    %v471 = vsel %vm208, %v468, 0.0
    %472 = vadd.xlane.f32.xlu0 %v471
    %v473 = vpop.xlane.xlu0 %472
    %v474 = vsel %vm208, %v470, 0.0
    %475 = vadd.xlane.f32.xlu0 %v474
    %v476 = vpop.xlane.xlu0 %475
    %v477 = vrcp.pop %v473
    %v478 = vmul.f32 %v468, %v477
    %v479 = vrcp.pop %v476
    %v480 = vmul.f32 %v470, %v479
    %v481 = vpack.c.bf16 %v480, %v478
    %482 = vrot.lane.b32.xlu0 %v152, 48
    %v483 = vpop.permute.xlu0 %482
    %v486 = vsel %vm208, %v481, 0
    %488 = vmatprep.subr.bf16.mxu0 0
    %489 = vmatpush1.bf16.msra.mxu0 %v483
    %490 = vmatprep.subr.bf16.mxu0 0
    %491 = vmatpush1.bf16.msra.mxu0 0
    %492 = vmatprep.subr.bf16.mxu0 0
    %493 = vmatpush1.bf16.msra.mxu0 0
    %494 = vmatprep.subr.bf16.mxu0 0
    %495 = vmatpush1.bf16.msra.mxu0 0
    %496 = vmatprep.subr.bf16.mxu0 0
    %497 = vmatpush1.bf16.msra.mxu0 0
    %498 = vmatprep.subr.bf16.mxu0 0
    %499 = vmatpush1.bf16.msra.mxu0 0
    %500 = vmatprep.subr.bf16.mxu0 0
    %501 = vmatpush1.bf16.msra.mxu0 0
    %502 = vmatprep.subr.bf16.mxu0 0
    %503 = vmatpush1.bf16.msra.mxu0 0
    %504 = vmatprep.subr.bf16.mxu0 0
    %505 = vmatpush1.bf16.msra.mxu0 0
    %506 = vmatprep.subr.bf16.mxu0 0
    %507 = vmatpush1.bf16.msra.mxu0 0
    %508 = vmatprep.subr.bf16.mxu0 0
    %509 = vmatpush1.bf16.msra.mxu0 0
    %510 = vmatprep.subr.bf16.mxu0 0
    %511 = vmatpush1.bf16.msra.mxu0 0
    %512 = vmatprep.subr.bf16.mxu0 0
    %513 = vmatpush1.bf16.msra.mxu0 0
    %514 = vmatprep.subr.bf16.mxu0 0
    %515 = vmatpush1.bf16.msra.mxu0 0
    %516 = vmatprep.subr.bf16.mxu0 0
    %517 = vmatpush1.bf16.msra.mxu0 0
    %518 = vmatprep.subr.bf16.mxu0 0
    %519 = vmatpush1.bf16.msra.mxu0 0
    %520 = vmatprep.mubr.bf16.mxu0 0
    %521 = vmatmul.mubr.bf16.gmra.mrb[0].mxu0 %v486
    %v522 = vpop.f32.mrb[0].mxu0
    %v523 = vadd.f32 0.0, %v522
    %v524 = vpop.f32.mrb[0].mxu0
    %v525 = vpop.f32.mrb[0].mxu0
    %v526 = vadd.f32 0.0, %v525
    %v527 = vpop.f32.mrb[0].mxu0
    %528 = vdwg.mxu0
    %529 = vrot.lane.b32.xlu0 %v152, 104
    %v530 = vpop.permute.xlu0 %529
    %531 = vrot.lane.b32.xlu0 %v152, 72
    %v532 = vpop.permute.xlu0 %531
    %v534 = vsel %vm156, %v530, 0
    %v537 = vsel %vm156, %v532, 0
    %539 = vmatprep.subr.bf16.mxu0 0
    %540 = vmatpush1.bf16.xpose.msra.mxu0 %v537
    %541 = vmatprep.subr.bf16.mxu0 0
    %542 = vmatpush1.bf16.xpose.msra.mxu0 0
    %543 = vmatprep.subr.bf16.mxu0 0
    %544 = vmatpush1.bf16.xpose.msra.mxu0 0
    %545 = vmatprep.subr.bf16.mxu0 0
    %546 = vmatpush1.bf16.xpose.msra.mxu0 0
    %547 = vmatprep.subr.bf16.mxu0 0
    %548 = vmatpush1.bf16.xpose.msra.mxu0 0
    %549 = vmatprep.subr.bf16.mxu0 0
    %550 = vmatpush1.bf16.xpose.msra.mxu0 0
    %551 = vmatprep.subr.bf16.mxu0 0
    %552 = vmatpush1.bf16.xpose.msra.mxu0 0
    %553 = vmatprep.subr.bf16.mxu0 0
    %554 = vmatpush1.bf16.xpose.msra.mxu0 0
    %555 = vmatprep.subr.bf16.mxu0 0
    %556 = vmatpush1.bf16.xpose.msra.mxu0 0
    %557 = vmatprep.subr.bf16.mxu0 0
    %558 = vmatpush1.bf16.xpose.msra.mxu0 0
    %559 = vmatprep.subr.bf16.mxu0 0
    %560 = vmatpush1.bf16.xpose.msra.mxu0 0
    %561 = vmatprep.subr.bf16.mxu0 0
    %562 = vmatpush1.bf16.xpose.msra.mxu0 0
    %563 = vmatprep.subr.bf16.mxu0 0
    %564 = vmatpush1.bf16.xpose.msra.mxu0 0
    %565 = vmatprep.subr.bf16.mxu0 0
    %566 = vmatpush1.bf16.xpose.msra.mxu0 0
    %567 = vmatprep.subr.bf16.mxu0 0
    %568 = vmatpush1.bf16.xpose.msra.mxu0 0
    %569 = vmatprep.subr.bf16.mxu0 0
    %570 = vmatpush1.bf16.xpose.msra.mxu0 0
    %571 = vmatprep.mubr.bf16.mxu0 0
    %572 = vmatmul.mubr.bf16.gmra.mrb[0].mxu0 %v534
    %v573 = vpop.f32.mrb[0].mxu0
    %v574 = vadd.f32 0.0, %v573
    %v575 = vpop.f32.mrb[0].mxu0
    %v576 = vpop.f32.mrb[0].mxu0
    %v577 = vadd.f32 0.0, %v576
    %v578 = vpop.f32.mrb[0].mxu0
    %579 = vdwg.mxu0
    %v580 = vmul.f32 %v574, 0.35355338
    %v581 = vmul.f32 %v577, 0.35355338
    %v582 = vadd.f32 %v580, %v21
    %v583 = vadd.f32 %v581, %v22
    %v584 = vsel %vm208, %v582, -inf
    %585 = vmax.xlane.f32.xlu0 %v584
    %v586 = vpop.xlane.xlu0 %585
    %v587 = vsel %vm208, %v583, -inf
    %588 = vmax.xlane.f32.xlu0 %v587
    %v589 = vpop.xlane.xlu0 %588
    %v590 = vsub.f32 %v582, %v586
    %v591 = vsub.f32 %v583, %v589
    %v592 = vmul.f32 %v590, 1.442695
    %v593 = vpow.pop %v592
    %v594 = vmul.f32 %v591, 1.442695
    %v595 = vpow.pop %v594
    %v596 = vsel %vm208, %v593, 0.0
    %597 = vadd.xlane.f32.xlu0 %v596
    %v598 = vpop.xlane.xlu0 %597
    %v599 = vsel %vm208, %v595, 0.0
    %600 = vadd.xlane.f32.xlu0 %v599
    %v601 = vpop.xlane.xlu0 %600
    %v602 = vrcp.pop %v598
    %v603 = vmul.f32 %v593, %v602
    %v604 = vrcp.pop %v601
    %v605 = vmul.f32 %v595, %v604
    %v606 = vpack.c.bf16 %v605, %v603
    %607 = vrot.lane.b32.xlu0 %v152, 40
    %v608 = vpop.permute.xlu0 %607
    %v611 = vsel %vm208, %v606, 0
    %613 = vmatprep.subr.bf16.mxu0 0
    %614 = vmatpush1.bf16.msra.mxu0 %v608
    %615 = vmatprep.subr.bf16.mxu0 0
    %616 = vmatpush1.bf16.msra.mxu0 0
    %617 = vmatprep.subr.bf16.mxu0 0
    %618 = vmatpush1.bf16.msra.mxu0 0
    %619 = vmatprep.subr.bf16.mxu0 0
    %620 = vmatpush1.bf16.msra.mxu0 0
    %621 = vmatprep.subr.bf16.mxu0 0
    %622 = vmatpush1.bf16.msra.mxu0 0
    %623 = vmatprep.subr.bf16.mxu0 0
    %624 = vmatpush1.bf16.msra.mxu0 0
    %625 = vmatprep.subr.bf16.mxu0 0
    %626 = vmatpush1.bf16.msra.mxu0 0
    %627 = vmatprep.subr.bf16.mxu0 0
    %628 = vmatpush1.bf16.msra.mxu0 0
    %629 = vmatprep.subr.bf16.mxu0 0
    %630 = vmatpush1.bf16.msra.mxu0 0
    %631 = vmatprep.subr.bf16.mxu0 0
    %632 = vmatpush1.bf16.msra.mxu0 0
    %633 = vmatprep.subr.bf16.mxu0 0
    %634 = vmatpush1.bf16.msra.mxu0 0
    %635 = vmatprep.subr.bf16.mxu0 0
    %636 = vmatpush1.bf16.msra.mxu0 0
    %637 = vmatprep.subr.bf16.mxu0 0
    %638 = vmatpush1.bf16.msra.mxu0 0
    %639 = vmatprep.subr.bf16.mxu0 0
    %640 = vmatpush1.bf16.msra.mxu0 0
    %641 = vmatprep.subr.bf16.mxu0 0
    %642 = vmatpush1.bf16.msra.mxu0 0
    %643 = vmatprep.subr.bf16.mxu0 0
    %644 = vmatpush1.bf16.msra.mxu0 0
    %645 = vmatprep.mubr.bf16.mxu0 0
    %646 = vmatmul.mubr.bf16.gmra.mrb[0].mxu0 %v611
    %v647 = vpop.f32.mrb[0].mxu0
    %v648 = vadd.f32 0.0, %v647
    %v649 = vpop.f32.mrb[0].mxu0
    %v650 = vpop.f32.mrb[0].mxu0
    %v651 = vadd.f32 0.0, %v650
    %v652 = vpop.f32.mrb[0].mxu0
    %653 = vdwg.mxu0
    %656 = vrot.lane.b32.xlu0 %v398, 8
    %v657 = vpop.permute.xlu0 %656
    %658 = vrot.lane.b32.xlu0 %v401, 8
    %v659 = vpop.permute.xlu0 %658
    %664 = vrot.lane.b32.xlu0 %v523, 16
    %v665 = vpop.permute.xlu0 %664
    %666 = vrot.lane.b32.xlu0 %v526, 16
    %v667 = vpop.permute.xlu0 %666
    %672 = vrot.lane.b32.xlu0 %v648, 24
    %v673 = vpop.permute.xlu0 %672
    %674 = vrot.lane.b32.xlu0 %v651, 24
    %v675 = vpop.permute.xlu0 %674
    %v678 = vsel %vm156, %v273, %v657
    %v679 = vsel %vm156, %v276, %v659
    %v680 = vsel %vm208, %v678, %v665
    %v681 = vsel %vm208, %v679, %v667
    %vm682 = vcmask 195584
    %v683 = vsel %vm682, %v680, %v673
    %v684 = vsel %vm682, %v681, %v675
    %v685 = vpack.c.bf16 %v684, %v683
    %v686 = vlaneseq
    %v687 = vshrl.u32 %v686, 7
    %v688 = vsub.s32 0, %v687
    %v689 = vrot.slane %v45, %v688
    %v694 = vunpack.c.l.b16 %v27
    %v695 = vunpack.c.l.b16 %v28
    %v696 = vunpack.c.l.b16 %v29
    %v697 = vunpack.c.l.b16 %v30
    %v698 = vpack.c.b16 %v695, %v694
    %v699 = vpack.c.b16 %v697, %v696
    %v703 = vsel %vm51, %v685, 0
    %705 = vmatprep.subr.bf16.mxu0 0
    %706 = vmatpush1.bf16.msra.mxu0 %v698
    %707 = vmatprep.subr.bf16.mxu0 0
    %708 = vmatpush1.bf16.msra.mxu0 %v699
    %709 = vmatprep.subr.bf16.mxu0 0
    %710 = vmatpush1.bf16.msra.mxu0 0
    %711 = vmatprep.subr.bf16.mxu0 0
    %712 = vmatpush1.bf16.msra.mxu0 0
    %713 = vmatprep.subr.bf16.mxu0 0
    %714 = vmatpush1.bf16.msra.mxu0 0
    %715 = vmatprep.subr.bf16.mxu0 0
    %716 = vmatpush1.bf16.msra.mxu0 0
    %717 = vmatprep.subr.bf16.mxu0 0
    %718 = vmatpush1.bf16.msra.mxu0 0
    %719 = vmatprep.subr.bf16.mxu0 0
    %720 = vmatpush1.bf16.msra.mxu0 0
    %721 = vmatprep.subr.bf16.mxu0 0
    %722 = vmatpush1.bf16.msra.mxu0 0
    %723 = vmatprep.subr.bf16.mxu0 0
    %724 = vmatpush1.bf16.msra.mxu0 0
    %725 = vmatprep.subr.bf16.mxu0 0
    %726 = vmatpush1.bf16.msra.mxu0 0
    %727 = vmatprep.subr.bf16.mxu0 0
    %728 = vmatpush1.bf16.msra.mxu0 0
    %729 = vmatprep.subr.bf16.mxu0 0
    %730 = vmatpush1.bf16.msra.mxu0 0
    %731 = vmatprep.subr.bf16.mxu0 0
    %732 = vmatpush1.bf16.msra.mxu0 0
    %733 = vmatprep.subr.bf16.mxu0 0
    %734 = vmatpush1.bf16.msra.mxu0 0
    %735 = vmatprep.subr.bf16.mxu0 0
    %736 = vmatpush1.bf16.msra.mxu0 0
    %737 = vmatprep.mubr.bf16.mxu0 0
    %738 = vmatmul.mubr.bf16.gmra.mrb[0].mxu0 %v703
    %v739 = vpop.f32.mrb[0].mxu0
    %v740 = vadd.f32 %v689, %v739
    %v741 = vpop.f32.mrb[0].mxu0
    %v742 = vpop.f32.mrb[0].mxu0
    %v743 = vadd.f32 %v689, %v742
    %v744 = vpop.f32.mrb[0].mxu0
    %745 = vdwg.mxu0
    %v746 = vadd.f32 %v19, %v740
    %v747 = vadd.f32 %v20, %v743
    %v748 = vsel %vm51, %v746, 0.0
    %749 = vadd.xlane.f32.xlu0 %v748
    %v750 = vpop.xlane.xlu0 %749
    %v751 = vsel %vm51, %v747, 0.0
    %752 = vadd.xlane.f32.xlu0 %v751
    %v753 = vpop.xlane.xlu0 %752
    %v754 = vmul.f32 %v750, %v58
    %v755 = vmul.f32 %v753, %v58
    %v756 = vsub.f32 %v746, %v754
    %v757 = vsub.f32 %v747, %v755
    %v758 = vmul.f32 %v756, %v756
    %v759 = vmul.f32 %v757, %v757
    %v760 = vsel %vm51, %v758, 0.0
    %761 = vadd.xlane.f32.xlu0 %v760
    %v762 = vpop.xlane.xlu0 %761
    %v763 = vsel %vm51, %v759, 0.0
    %764 = vadd.xlane.f32.xlu0 %v763
    %v765 = vpop.xlane.xlu0 %764
    %v766 = vmul.f32 %v762, %v58
    %v767 = vmul.f32 %v765, %v58
    %v768 = vadd.f32 %v766, 1e-05
    %v769 = vadd.f32 %v767, 1e-05
    %v770 = vrsqrt.pop %v768
    %v771 = vrsqrt.pop %v769
    %v772 = vmul.f32 %v756, %v770
    %v773 = vmul.f32 %v757, %v771
    %v774 = vlaneseq
    %v775 = vshrl.u32 %v774, 7
    %v776 = vsub.s32 0, %v775
    %v777 = vrot.slane %v49, %v776
    %v778 = vmul.f32 %v772, %v777
    %v779 = vmul.f32 %v773, %v777
    %v780 = vlaneseq
    %v781 = vshrl.u32 %v780, 7
    %v782 = vsub.s32 0, %v781
    %v783 = vrot.slane %v50, %v782
    %v784 = vadd.f32 %v778, %v783
    %v785 = vadd.f32 %v779, %v783
    %v786 = vpack.c.bf16 %v785, %v784
    %v787 = vlaneseq
    %v788 = vshrl.u32 %v787, 7
    %v789 = vsub.s32 0, %v788
    %v790 = vrot.slane %v44, %v789
    %v795 = vunpack.c.l.b16 %v31
    %v796 = vunpack.c.l.b16 %v32
    %v797 = vunpack.c.l.b16 %v33
    %v798 = vunpack.c.l.b16 %v34
    %v799 = vpack.c.b16 %v796, %v795
    %v800 = vpack.c.b16 %v798, %v797
    %v804 = vsel %vm51, %v786, 0
    %806 = vmatprep.subr.bf16.mxu0 0
    %807 = vmatpush1.bf16.msra.mxu0 %v799
    %808 = vmatprep.subr.bf16.mxu0 0
    %809 = vmatpush1.bf16.msra.mxu0 %v800
    %810 = vmatprep.subr.bf16.mxu0 0
    %811 = vmatpush1.bf16.msra.mxu0 0
    %812 = vmatprep.subr.bf16.mxu0 0
    %813 = vmatpush1.bf16.msra.mxu0 0
    %814 = vmatprep.subr.bf16.mxu0 0
    %815 = vmatpush1.bf16.msra.mxu0 0
    %816 = vmatprep.subr.bf16.mxu0 0
    %817 = vmatpush1.bf16.msra.mxu0 0
    %818 = vmatprep.subr.bf16.mxu0 0
    %819 = vmatpush1.bf16.msra.mxu0 0
    %820 = vmatprep.subr.bf16.mxu0 0
    %821 = vmatpush1.bf16.msra.mxu0 0
    %822 = vmatprep.subr.bf16.mxu0 0
    %823 = vmatpush1.bf16.msra.mxu0 0
    %824 = vmatprep.subr.bf16.mxu0 0
    %825 = vmatpush1.bf16.msra.mxu0 0
    %826 = vmatprep.subr.bf16.mxu0 0
    %827 = vmatpush1.bf16.msra.mxu0 0
    %828 = vmatprep.subr.bf16.mxu0 0
    %829 = vmatpush1.bf16.msra.mxu0 0
    %830 = vmatprep.subr.bf16.mxu0 0
    %831 = vmatpush1.bf16.msra.mxu0 0
    %832 = vmatprep.subr.bf16.mxu0 0
    %833 = vmatpush1.bf16.msra.mxu0 0
    %834 = vmatprep.subr.bf16.mxu0 0
    %835 = vmatpush1.bf16.msra.mxu0 0
    %836 = vmatprep.subr.bf16.mxu0 0
    %837 = vmatpush1.bf16.msra.mxu0 0
    %838 = vmatprep.mubr.bf16.mxu0 0
    %839 = vmatmul.mubr.bf16.gmra.mrb[0].mxu0 %v804
    %v840 = vpop.f32.mrb[0].mxu0
    %v841 = vadd.f32 %v790, %v840
    %v842 = vpop.f32.mrb[0].mxu0
    %v843 = vpop.f32.mrb[0].mxu0
    %v844 = vadd.f32 %v790, %v843
    %v845 = vpop.f32.mrb[0].mxu0
    %846 = vdwg.mxu0
    %v847 = vmax.f32 %v841, 0.0
    %v848 = vmax.f32 %v844, 0.0
    %v849 = vpack.c.bf16 %v848, %v847
    %v850 = vlaneseq
    %v851 = vshrl.u32 %v850, 7
    %v852 = vsub.s32 0, %v851
    %v853 = vrot.slane %v46, %v852
    %v862 = vunpack.c.l.b16 %v35
    %v863 = vunpack.c.l.b16 %v36
    %v864 = vunpack.c.l.b16 %v37
    %v865 = vunpack.c.l.b16 %v38
    %v866 = vunpack.c.l.b16 %v39
    %v867 = vunpack.c.l.b16 %v40
    %v868 = vunpack.c.l.b16 %v41
    %v869 = vunpack.c.l.b16 %v42
    %v870 = vpack.c.b16 %v863, %v862
    %v871 = vpack.c.b16 %v865, %v864
    %v872 = vpack.c.b16 %v867, %v866
    %v873 = vpack.c.b16 %v869, %v868
    %vm878 = vcmask 523264
    %v880 = vsel %vm878, %v849, 0
    %882 = vmatprep.subr.bf16.mxu0 0
    %883 = vmatpush1.bf16.msra.mxu0 %v870
    %884 = vmatprep.subr.bf16.mxu0 0
    %885 = vmatpush1.bf16.msra.mxu0 %v871
    %886 = vmatprep.subr.bf16.mxu0 0
    %887 = vmatpush1.bf16.msra.mxu0 %v872
    %888 = vmatprep.subr.bf16.mxu0 0
    %889 = vmatpush1.bf16.msra.mxu0 %v873
    %890 = vmatprep.subr.bf16.mxu0 0
    %891 = vmatpush1.bf16.msra.mxu0 0
    %892 = vmatprep.subr.bf16.mxu0 0
    %893 = vmatpush1.bf16.msra.mxu0 0
    %894 = vmatprep.subr.bf16.mxu0 0
    %895 = vmatpush1.bf16.msra.mxu0 0
    %896 = vmatprep.subr.bf16.mxu0 0
    %897 = vmatpush1.bf16.msra.mxu0 0
    %898 = vmatprep.subr.bf16.mxu0 0
    %899 = vmatpush1.bf16.msra.mxu0 0
    %900 = vmatprep.subr.bf16.mxu0 0
    %901 = vmatpush1.bf16.msra.mxu0 0
    %902 = vmatprep.subr.bf16.mxu0 0
    %903 = vmatpush1.bf16.msra.mxu0 0
    %904 = vmatprep.subr.bf16.mxu0 0
    %905 = vmatpush1.bf16.msra.mxu0 0
    %906 = vmatprep.subr.bf16.mxu0 0
    %907 = vmatpush1.bf16.msra.mxu0 0
    %908 = vmatprep.subr.bf16.mxu0 0
    %909 = vmatpush1.bf16.msra.mxu0 0
    %910 = vmatprep.subr.bf16.mxu0 0
    %911 = vmatpush1.bf16.msra.mxu0 0
    %912 = vmatprep.subr.bf16.mxu0 0
    %913 = vmatpush1.bf16.msra.mxu0 0
    %914 = vmatprep.mubr.bf16.mxu0 0
    %915 = vmatmul.mubr.bf16.gmra.mrb[0].mxu0 %v880
    %v916 = vpop.f32.mrb[0].mxu0
    %v917 = vadd.f32 %v853, %v916
    %v918 = vpop.f32.mrb[0].mxu0
    %v919 = vpop.f32.mrb[0].mxu0
    %v920 = vadd.f32 %v853, %v919
    %v921 = vpop.f32.mrb[0].mxu0
    %922 = vdwg.mxu0
    %v923 = vadd.f32 %v746, %v917
    %v924 = vadd.f32 %v747, %v920
    %925 = vst.msk [vmem:[#allocation2] sm:$0xff] %vm51, %v923
    %926 = vst.msk [vmem:[#allocation2 + $0x8] sm:$0xff] %vm51, %v924
    // Predicated region
    $region18: #{transformer_encoder_layer.1} parent=1 // pred_check
      _
    $region19: #{transformer_encoder_layer.1} parent=1 // pred_check_branch
      %928 = sbr.rel (0) target = $region21
    $region20: #{transformer_encoder_layer.1} parent=1 // pred_region
      %s930 = ssub.s32 256, 256
      %931 = vsyncadd [#allocation3], %s930
      %s932 = sshll.u32 [#allocation2], 4
      %s933 = int_to_ptr.vmem [resolvable:$true] %s932
      %938 = dma.vmem_to_hbm [thread:$0]  %s933, 256, %s4, [#allocation3], 128, 128, 8
    $region21: #{transformer_encoder_layer.1} parent=1 // pred_fallthru
      _
    // Predicated region
    $region22: #{transformer_encoder_layer.1} parent=1 // pred_check
      _
    $region23: #{transformer_encoder_layer.1} parent=1 // pred_check_branch
      %940 = sbr.rel (0) target = $region25
    $region24: #{transformer_encoder_layer.1} parent=1 // pred_region
      %941 = dma.done [#allocation3], 256
    $region25: #{transformer_encoder_layer.1} parent=1 // pred_fallthru
      _
    %942 = vsyncpa [#allocation3], 1

</llo_original>
